<compile_context>
chip_gen: v5e
topology: v5e:2x2
jax: 0.10.0
libtpu: 0.0.40
codegen_flags: <defaults>
</compile_context>

<pallas_src>
import functools

import jax
import jax.numpy as jnp
from jax import lax
from jax.experimental import pallas as pl
from jax.experimental.pallas import tpu as pltpu


def _entropy_partial_kernel(x_ref, acc_ref, *, eps, tm, lane, rows,
                            steps_per_core, mask_needed):
    """Accumulate per-core partial sums of -x*log(x+eps) into acc_ref (1,8,lane)."""
    p = pl.program_id(0)   # core / parallel axis
    i = pl.program_id(1)   # sequential accumulation axis

    @pl.when(i == 0)
    def _():
        acc_ref[...] = jnp.zeros_like(acc_ref)

    # Cast in-register; keeps native dtype (e.g. bf16) on the HBM->VMEM path.
    x = x_ref[...].astype(jnp.float32)                      # (tm, lane)

    if mask_needed:
        # Zero out rows beyond the valid row count (ragged / clamped blocks).
        gstep = p * steps_per_core + i
        row0 = gstep * tm
        row_idx = row0 + lax.broadcasted_iota(jnp.int32, (tm, lane), 0)
        x = jnp.where(row_idx < rows, x, 0.0)               # 0 contributes 0

    terms = -x * jnp.log(x + eps)                           # VPU + EUP

    # (tm, lane) -> (8, lane): sublane-aligned static slices, VPU-only adds.
    part = terms[0:8, :]
    for g in range(1, tm // 8):
        part = part + terms[8 * g:8 * (g + 1), :]

    acc_ref[...] += part[None]                              # (1, 8, lane)


def entropy_loss(x, eps=1e-12):
    """Pallas TPU implementation of EntropyLoss.forward.

    Args:
      x: array of shape [B, ..., C] (probabilities).
      eps: numerical-stability constant (Python float).

    Returns:
      Scalar float32 loss.
    """
    c = x.shape[-1]
    n = x.size
    r_denom = n // c                     # number of positions averaged over

    flat = x.reshape(-1)                 # free (contiguous bitcast)

    # Pick the largest lane width (multiple of 128) so that n reshapes exactly
    # into (rows, lane) with rows a multiple of 8 -> no padding, no extra HBM pass.
    lane = None
    for cand in (2048, 1024, 512, 256, 128):
        if n % (8 * cand) == 0:
            lane = cand
            break
    if lane is None:
        # Awkward size: pad the flat array with zeros (-0*log(0+eps) == 0).
        lane = 128
        n_eff = pl.cdiv(n, 8 * lane) * (8 * lane)
        flat = jnp.pad(flat, (0, n_eff - n))
    else:
        n_eff = n

    rows = n_eff // lane
    x2d = flat.reshape(rows, lane)

    # Row tile: multiple of 8, <= rows, block capped at ~2 MiB of f32.
    cap = max(8, (524288 // lane) // 8 * 8)
    tm = min(512, rows, cap)

    total_steps = pl.cdiv(rows, tm)
    num_cores = 2 if total_steps >= 2 else 1     # exploit v7x dual-TC; harmless on 1-TC chips
    steps_per_core = pl.cdiv(total_steps, num_cores)
    mask_needed = (num_cores * steps_per_core * tm != rows)
    last_block = total_steps - 1

    def x_index_map(p, i):
        g = p * steps_per_core + i
        # Clamp so every block index is in range; fully-past-the-end steps are
        # zeroed by the in-kernel mask and contribute nothing.
        return (jnp.minimum(g, last_block), 0)

    kernel = functools.partial(
        _entropy_partial_kernel,
        eps=float(eps), tm=tm, lane=lane, rows=rows,
        steps_per_core=steps_per_core, mask_needed=mask_needed)

    partials = pl.pallas_call(
        kernel,
        out_shape=jax.ShapeDtypeStruct((num_cores, 8, lane), jnp.float32),
        grid_spec=pltpu.PrefetchScalarGridSpec(
            num_scalar_prefetch=0,
            grid=(num_cores, steps_per_core),
            in_specs=[
                # (tm, lane): tm multiple of 8, lane multiple of 128 -> lane-dense,
                # unmasked vector loads / DMA.
                pl.BlockSpec((tm, lane), x_index_map),
            ],
            out_specs=pl.BlockSpec((1, 8, lane), lambda p, i: (p, 0, 0)),
        ),
        compiler_params=pltpu.CompilerParams(
            dimension_semantics=("parallel", "arbitrary"),
        ),
        cost_estimate=pl.CostEstimate(
            flops=3 * n,
            transcendentals=n,
            bytes_accessed=n * x.dtype.itemsize + num_cores * 8 * lane * 4,
        ),
    )(x2d)

    # Final tiny reduce + mean over all non-channel positions.
    return (jnp.sum(partials) / jnp.float32(r_denom)).astype(jnp.float32)


def entropy_loss_ref(x, eps=1e-12):
    """Pure-JAX reference matching the PyTorch module."""
    x = x.astype(jnp.float32)
    loss = -x * jnp.log(x + eps)
    loss = jnp.sum(loss, axis=-1)
    return jnp.mean(loss)


if __name__ == "__main__":
    key = jax.random.PRNGKey(0)
    # Probability-like input of shape [B, C, H, W] -> entropy over last dim W.
    logits = jax.random.normal(key, (2, 4, 16, 16), dtype=jnp.float32)
    x = jax.nn.softmax(logits, axis=-1)

    out = jax.block_until_ready(entropy_loss(x))
    ref = jax.block_until_ready(entropy_loss_ref(x))

    assert jnp.allclose(out, ref, rtol=1e-5, atol=1e-6), (out, ref)
    print("KERNEL_OK")
</pallas_src>

<mosaic_0001>
module attributes {stable_mosaic.version = 11 : i64} {
  func.func @_entropy_partial_kernel(%arg0: i32, %arg1: i32, %arg2: memref<8x256xf32, #tpu.memory_space<vmem>>, %arg3: memref<1x8x256xf32, #tpu.memory_space<vmem>>) attributes {dimension_semantics = [#tpu.dimension_semantics<parallel>, #tpu.dimension_semantics<arbitrary>], iteration_bounds = array<i64: 1, 1>, scalar_prefetch = 0 : i64, scratch_operands = 0 : i64, tpu.core_type = #tpu.core_type<tc>, window_params = [{transform_indices = @transform_0, window_bounds = array<i64: 8, 256>}, {transform_indices = @transform_1, window_bounds = array<i64: 1, 8, 256>}]} {
    %c0_i32 = arith.constant 0 : i32
    %0 = arith.cmpi eq, %arg1, %c0_i32 : i32
    %1 = arith.extui %0 : i1 to i32
    %c0_i32_0 = arith.constant 0 : i32
    %2 = arith.cmpi ne, %1, %c0_i32_0 : i32
    scf.if %2 {
      %cst_9 = arith.constant 0.000000e+00 : f32
      %14 = vector.broadcast %cst_9 : f32 to vector<1x8x256xf32>
      %c0_10 = arith.constant 0 : index
      %c0_11 = arith.constant 0 : index
      %c0_12 = arith.constant 0 : index
      %15 = vector.load %arg3[%c0_10, %c0_11, %c0_12] : memref<1x8x256xf32, #tpu.memory_space<vmem>>, vector<1x8x256xf32>
      tpu.vector_store %arg3[%c0_10, %c0_11, %c0_12], %14 {strides = array<i32>} : memref<1x8x256xf32, #tpu.memory_space<vmem>>, vector<1x8x256xf32>,
    } else {
    }
    %c0 = arith.constant 0 : index
    %c0_1 = arith.constant 0 : index
    %3 = vector.load %arg2[%c0, %c0_1] : memref<8x256xf32, #tpu.memory_space<vmem>>, vector<8x256xf32>
    %cst = arith.constant 0.000000e+00 : f32
    %4 = vector.broadcast %cst : f32 to vector<8x256xf32>
    %5 = arith.subf %4, %3 : vector<8x256xf32>
    %cst_2 = arith.constant 9.99999996E-13 : f32
    %6 = vector.broadcast %cst_2 : f32 to vector<8x256xf32>
    %7 = arith.addf %3, %6 : vector<8x256xf32>
    %8 = math.log %7 : vector<8x256xf32>
    %9 = arith.mulf %5, %8 : vector<8x256xf32>
    %c0_3 = arith.constant 0 : index
    %c0_4 = arith.constant 0 : index
    %c0_5 = arith.constant 0 : index
    %10 = vector.load %arg3[%c0_3, %c0_4, %c0_5] : memref<1x8x256xf32, #tpu.memory_space<vmem>>, vector<1x8x256xf32>
    %11 = vector.shape_cast %9 : vector<8x256xf32> to vector<1x8x256xf32>
    %12 = arith.addf %10, %11 : vector<1x8x256xf32>
    %c0_6 = arith.constant 0 : index
    %c0_7 = arith.constant 0 : index
    %c0_8 = arith.constant 0 : index
    %13 = vector.load %arg3[%c0_6, %c0_7, %c0_8] : memref<1x8x256xf32, #tpu.memory_space<vmem>>, vector<1x8x256xf32>
    tpu.vector_store %arg3[%c0_6, %c0_7, %c0_8], %12 {strides = array<i32>} : memref<1x8x256xf32, #tpu.memory_space<vmem>>, vector<1x8x256xf32>,
    return
  }
  func.func @transform_0(%arg0: i32, %arg1: i32) -> (i32, i32) {
    %c1_i32 = arith.constant 1 : i32
    %0 = arith.muli %arg0, %c1_i32 : i32
    %1 = arith.addi %0, %arg1 : i32
    %c0_i32 = arith.constant 0 : i32
    %2 = arith.minsi %1, %c0_i32 : i32
    %c0_i32_0 = arith.constant 0 : i32
    %c0_i32_1 = arith.constant 0 : i32
    return %2, %c0_i32_0 : i32, i32
  }
  func.func @transform_1(%arg0: i32, %arg1: i32) -> (i32, i32, i32) {
    %c0_i32 = arith.constant 0 : i32
    %c0_i32_0 = arith.constant 0 : i32
    %c0_i32_1 = arith.constant 0 : i32
    return %arg0, %c0_i32, %c0_i32_0 : i32, i32, i32
  }
}

</mosaic_0001>

<llo_original>
// kernel: tpu_custom_call.1
$region0: #{tpu_custom_call.1}
  #allocation0 [shape = 'u32[]', space=smem, size = 0x4, offset = 0x4, fixed_abs, tag = 'smem constant byte address 0x4 - core index']
  #allocation1 [shape = 'u32[72,128]{1,0:T(1,128)}', space=vmem, size = 0x9000, scoped, tag = 'internal scratch']
  %s0 = inlined_call_operand.hbm [shape: f32[8,256], index: 0, kind: input, shape index: {}]
  %s1 = inlined_call_operand.hbm [shape: f32[1,8,256], index: 1, kind: output, shape index: {}]
  %s2 = sld [smem:[#allocation0]]
  $region22: #{tpu_custom_call.1} parent=0
    _
  %s4 = ssub.s32 1, %s2
  %s5 = scalar_select 0, %s4, %s2
  $region1: #{tpu_custom_call.1} parent=0
    #allocation2 [shape = 'u8[8192]{0}', space=vmem, size = 0x2000, scoped, tag = 'input window, operand 0, single buffered']
    #allocation3 [shape = 's32[1]{0}', space=sflag, size = 0x4, scoped, tag = 'scoped memory for tpu_custom_call.1']
    #allocation4 [shape = 's32[1]{0}', space=sflag, size = 0x4, scoped, tag = 'scoped memory for tpu_custom_call.1']
    #allocation5 [shape = 'u8[8192]{0}', space=vmem, size = 0x2000, scoped, tag = 'output window, operand 0, single buffered']
    %6 = vsyncpa [#allocation3], 0
    %7 = vsyncpa [#allocation4], 0
    // Predicated region
    $region2: #{tpu_custom_call.1} parent=1 // pred_check
      _
    $region3: #{tpu_custom_call.1} parent=1 // pred_check_branch
      %9 = sbr.rel (0) target = $region5
    $region4: #{tpu_custom_call.1} parent=1 // pred_region
      %s10 = sadd.s32 0, 0
      %p11 = scmp.lt.s32.totalorder %s10, 0
      %s12 = scalar_select %p11, %s10, 0
      %14 = vsyncadd [#allocation3], 0
      %s15 = smul.addr %s12, 2
      %s16 = smul.addr %s15, 8
      %s17 = scalar_lea.hbm %s0, %s16
      %s19 = sshll.u32 %s17, 4
      %s20 = int_to_ptr.hbm [resolvable:$true] %s19
      %s21 = sshll.u32 [#allocation2], 4
      %s22 = int_to_ptr.vmem [resolvable:$true] %s21
      %24 = dma.hbm_to_vmem [thread:$0]  %s20, 256, %s22, [#allocation3]
    $region5: #{tpu_custom_call.1} parent=1 // pred_fallthru
      _
    // Predicated region
    $region6: #{tpu_custom_call.1} parent=1 // pred_check
      _
    $region7: #{tpu_custom_call.1} parent=1 // pred_check_branch
      %26 = sbr.rel (0) target = $region9
    $region8: #{tpu_custom_call.1} parent=1 // pred_region
      %28 = dma.done [#allocation3], 256
    $region9: #{tpu_custom_call.1} parent=1 // pred_fallthru
      _
    %s29 = sadd.s32 0, 0
    %p30 = scmp.lt.s32.totalorder %s29, 0
    %s31 = scalar_select %p30, %s29, 0
    %p32 = scmp.eq.s32.totalorder 0, 0
    // Predicated region
    $region10: #{tpu_custom_call.1} parent=1 // pred_check
      %p33 = pneg %p32
    $region11: #{tpu_custom_call.1} parent=1 // pred_check_branch
      %35 = sbr.rel (%p33) target = $region13
    $region12: #{tpu_custom_call.1} parent=1 // pred_region
      %36 = vst [vmem:[#allocation5] sm:$0xff] 0.0
      %37 = vst [vmem:[#allocation5 + $0x8] sm:$0xff] 0.0
    $region13: #{tpu_custom_call.1} parent=1 // pred_fallthru
      _
    %v38 = vld [vmem:[#allocation2] sm:$0xff]
    %v39 = vld [vmem:[#allocation2 + $0x8] sm:$0xff]
    %v40 = vsub.f32 0.0, %v38
    %v41 = vsub.f32 0.0, %v39
    %v42 = vadd.f32 %v38, 1e-12
    %v43 = vadd.f32 %v39, 1e-12
    %v44 = vlog2.pop %v42
    %v45 = vmul.f32 %v44, 0.6931472
    %v46 = vlog2.pop %v43
    %v47 = vmul.f32 %v46, 0.6931472
    %v48 = vmul.f32 %v40, %v45
    %v49 = vmul.f32 %v41, %v47
    %v50 = vld [vmem:[#allocation5] sm:$0xff]
    %v51 = vld [vmem:[#allocation5 + $0x8] sm:$0xff]
    %v52 = vadd.f32 %v50, %v48
    %v53 = vadd.f32 %v51, %v49
    %54 = vst [vmem:[#allocation5] sm:$0xff] %v52
    %55 = vst [vmem:[#allocation5 + $0x8] sm:$0xff] %v53
    // Predicated region
    $region14: #{tpu_custom_call.1} parent=1 // pred_check
      _
    $region15: #{tpu_custom_call.1} parent=1 // pred_check_branch
      %57 = sbr.rel (0) target = $region17
    $region16: #{tpu_custom_call.1} parent=1 // pred_region
      %59 = vsyncadd [#allocation4], 0
      %s61 = sshll.u32 [#allocation5], 4
      %s62 = int_to_ptr.vmem [resolvable:$true] %s61
      %s63 = sshll.u32 %s1, 4
      %s64 = int_to_ptr.hbm [resolvable:$true] %s63
      %66 = dma.vmem_to_hbm [thread:$0]  %s62, 256, %s64, [#allocation4]
    $region17: #{tpu_custom_call.1} parent=1 // pred_fallthru
      _
    // Predicated region
    $region18: #{tpu_custom_call.1} parent=1 // pred_check
      _
    $region19: #{tpu_custom_call.1} parent=1 // pred_check_branch
      %68 = sbr.rel (0) target = $region21
    $region20: #{tpu_custom_call.1} parent=1 // pred_region
      %70 = dma.done [#allocation4], 256
    $region21: #{tpu_custom_call.1} parent=1 // pred_fallthru
      _
    %71 = vsyncpa [#allocation3], 1
    %72 = vsyncpa [#allocation4], 1

</llo_original>
